<compile_context>
chip_gen: v6e
topology: v6e:2x2x1
jax: 0.10.0
libtpu: 0.0.40
codegen_flags: <defaults>
</compile_context>

<pallas_src>
import functools

import jax
import jax.numpy as jnp
from jax.experimental import pallas as pl
from jax.experimental.pallas import tpu as pltpu


# ---------------------------------------------------------------------------
# Fused kernel: one sample per grid step.
# ---------------------------------------------------------------------------
def mlp_hr_kernel(x_ref, w_ref, shift_ref, w1_ref, b1_ref, w2_ref, b2_ref,
                  o_ref, *, T, HW):
    # x_ref:     (1, C, M)   sample n, NCDHW order flattened, M = T*HW (lanes), bf16
    # w_ref:     (C, C)      conv weight with BN scale folded in (C_out, C_in), bf16
    # shift_ref: (C, 1)      folded conv-bias + BN shift per output channel, f32
    # w1_ref:    (T, C, C)   fc1 weight repacked to (t, c_in, c_out), 1/HW folded, f32
    # b1_ref:    (1, C)      fc1 bias, f32
    # w2_ref:    (1, C)      fc2 weight, f32
    # b2_ref:    (1, 1)      fc2 bias, f32
    # o_ref:     (1, 1, 1)   scalar output for this sample, f32
    x = x_ref[0]                                                       # (C, M) bf16

    # 1x1x1 conv + folded BN affine + ReLU (bf16 MXU matmul, f32 accumulate).
    y = jnp.dot(w_ref[...], x, preferred_element_type=jnp.float32)    # (C, M) f32
    y = jnp.maximum(y + shift_ref[...], 0.0)

    # AdaptiveAvgPool3d((T,1,1)) fused with fc1:
    #   pooled[c,t] = (1/HW) * sum_s y[c, t*HW+s]   (lane-group reduce, no operand)
    #   h[j]        = sum_{c,t} fc1_w[j, c*T+t] * pooled[c,t] + b1[j]
    # Per frame t: broadcast the per-channel spatial sum (C,1) over lanes,
    # multiply with w1[t] (C_in, C_out), accumulate; reduce over sublanes once.
    inner = None                                                       # (C, C_out)
    for t in range(T):
        col = jnp.sum(y[:, t * HW:(t + 1) * HW], axis=1, keepdims=True)  # (C, 1)
        term = w1_ref[t] * col                                         # (C, C_out)
        inner = term if inner is None else inner + term
    h = jnp.sum(inner, axis=0, keepdims=True) + b1_ref[...]           # (1, C_out)
    h = jnp.maximum(h, 0.0)

    # fc2 (C -> 1): VPU multiply + lane reduce (no 1-column MXU matmul).
    out = jnp.sum(h * w2_ref[...], axis=1, keepdims=True) + b2_ref[...]  # (1, 1)
    o_ref[0] = out


# ---------------------------------------------------------------------------
# Wrapper
# ---------------------------------------------------------------------------
@jax.jit
def mlp_hr_forward(x, params):
    """x: (N, C, T, H, W) float32, NCDHW exactly like the PyTorch module."""
    N, C, T, H, W = x.shape
    HW = H * W
    M = T * HW
    eps = 1e-5

    # AdaptiveAvgPool3d((frames,1,1)) treated as pure spatial mean => T == frames.
    frames = params["fc1_w"].shape[1] // C
    assert frames == T, (frames, T)

    # Fold eval-mode BN + conv bias into the conv weight / per-channel shift:
    #   bn(conv(x)) = (scale*W) @ x + (scale*(b - mean) + beta)    (f32 fold)
    scale = params["bn_gamma"] / jnp.sqrt(params["bn_var"] + eps)        # (C,)
    w_fold = (scale[:, None] * params["conv_w"].reshape(C, C)).astype(jnp.bfloat16)
    shift = scale * (params["conv_b"] - params["bn_mean"]) + params["bn_beta"]
    shift = shift.reshape(C, 1).astype(jnp.float32)

    # fc1 weight repacked to (T, C_in, C_out) with the 1/HW pooling scale folded.
    # PyTorch flattens (N, C, T, 1, 1) c-major / t-minor => fc1_w[j, c*T + t].
    w1 = params["fc1_w"].reshape(C, C, T)                # (C_out, C_in, T)
    w1 = (jnp.transpose(w1, (2, 1, 0)) * (1.0 / HW)).astype(jnp.float32)  # (T, C_in, C_out)
    b1 = params["fc1_b"].reshape(1, C).astype(jnp.float32)
    w2 = params["fc2_w"].reshape(1, C).astype(jnp.float32)
    b2 = params["fc2_b"].reshape(1, 1).astype(jnp.float32)

    # Free reshape (contiguous NCDHW): m = t*HW + s.  bf16 halves HBM traffic
    # for the one large per-sample operand (kernel is HBM-bound on x).
    x3 = x.reshape(N, C, M).astype(jnp.bfloat16)

    kernel = functools.partial(mlp_hr_kernel, T=T, HW=HW)

    # TODO(synk): for very large C*M per sample, raise vmem_limit_bytes
    #   (v5e default scoped 16 MiB / v6e 32 MiB) or add an "arbitrary" T grid
    #   axis with a pooled-partial VMEM accumulator (v7x: 64 MiB physical VMEM).
    # TODO(synk): constant operands (w_fold, shift, w1, b1, w2, b2) could be
    #   single-buffered (pipeline_mode=pl.Buffered(1)); after the repack they
    #   are tiny, so default double-buffering costs little.
    # TODO(synk): for the small-M / huge-N regime, process several samples per
    #   grid step (lane-wider output store); kept per-sample here so the
    #   "parallel" N axis still splits evenly across v7x's two TensorCores.
    out = pl.pallas_call(
        kernel,
        out_shape=jax.ShapeDtypeStruct((N, 1, 1), jnp.float32),
        grid=(N,),
        in_specs=[
            pl.BlockSpec((1, C, M), lambda n: (n, 0, 0)),
            pl.BlockSpec((C, C), lambda n: (0, 0)),
            pl.BlockSpec((C, 1), lambda n: (0, 0)),
            pl.BlockSpec((T, C, C), lambda n: (0, 0, 0)),
            pl.BlockSpec((1, C), lambda n: (0, 0)),
            pl.BlockSpec((1, C), lambda n: (0, 0)),
            pl.BlockSpec((1, 1), lambda n: (0, 0)),
        ],
        out_specs=pl.BlockSpec((1, 1, 1), lambda n: (n, 0, 0)),
        compiler_params=pltpu.CompilerParams(
            dimension_semantics=("parallel",)),
    )(x3, w_fold, shift, w1, b1, w2, b2)
    return out.reshape(N, 1)


# ---------------------------------------------------------------------------
# Pure-JAX reference (mirrors the PyTorch forward, eval-mode BN, full f32)
# ---------------------------------------------------------------------------
def mlp_hr_reference(x, params):
    N, C, T, H, W = x.shape
    eps = 1e-5
    w = params["conv_w"].reshape(C, C)                          # (C_out, C_in)
    y = jnp.einsum("ncthw,oc->nothw", x, w)
    y = y + params["conv_b"][None, :, None, None, None]
    scale = params["bn_gamma"] / jnp.sqrt(params["bn_var"] + eps)
    shift = params["bn_beta"] - params["bn_mean"] * scale
    y = y * scale[None, :, None, None, None] + shift[None, :, None, None, None]
    y = jnp.maximum(y, 0.0)
    y = jnp.mean(y, axis=(3, 4))                                # (N, C, T)
    y = y.reshape(N, C * T)                                     # c-major flatten
    h = jnp.maximum(y @ params["fc1_w"].T + params["fc1_b"], 0.0)
    return h @ params["fc2_w"].T + params["fc2_b"]


# ---------------------------------------------------------------------------
if __name__ == "__main__":
    # Small, deterministic shapes: batch=2, d_model=32, frames=8, spatial 4x4.
    N, C, T, H, W = 2, 32, 8, 4, 4
    F = T * C

    keys = jax.random.split(jax.random.PRNGKey(0), 12)
    params = {
        "conv_w":   0.1 * jax.random.normal(keys[0], (C, C, 1, 1, 1), jnp.float32),
        "conv_b":   0.1 * jax.random.normal(keys[1], (C,), jnp.float32),
        "bn_gamma": 1.0 + 0.1 * jax.random.normal(keys[2], (C,), jnp.float32),
        "bn_beta":  0.1 * jax.random.normal(keys[3], (C,), jnp.float32),
        "bn_mean":  0.1 * jax.random.normal(keys[4], (C,), jnp.float32),
        "bn_var":   jax.random.uniform(keys[5], (C,), jnp.float32, 0.5, 1.5),
        "fc1_w":    0.05 * jax.random.normal(keys[6], (C, F), jnp.float32),
        "fc1_b":    0.05 * jax.random.normal(keys[7], (C,), jnp.float32),
        "fc2_w":    0.05 * jax.random.normal(keys[8], (1, C), jnp.float32),
        "fc2_b":    0.05 * jax.random.normal(keys[9], (1,), jnp.float32),
    }
    x = jax.random.normal(keys[10], (N, C, T, H, W), jnp.float32)

    out = mlp_hr_forward(x, params)
    out = jax.block_until_ready(out)

    ref = mlp_hr_reference(x, params)
    assert out.shape == (N, 1), out.shape
    # Tolerance loosened for the bf16 conv-matmul inputs (f32 accumulation).
    assert jnp.allclose(out, ref, rtol=2e-2, atol=2e-2), (out, ref)

    print("KERNEL_OK")
</pallas_src>

<mosaic_0001>
module attributes {stable_mosaic.version = 11 : i64} {
  func.func @mlp_hr_kernel(%arg0: i32, %arg1: memref<1x32x128xbf16, #tpu.memory_space<vmem>>, %arg2: memref<32x32xbf16, #tpu.memory_space<vmem>>, %arg3: memref<32x1xf32, #tpu.memory_space<vmem>>, %arg4: memref<8x32x32xf32, #tpu.memory_space<vmem>>, %arg5: memref<1x32xf32, #tpu.memory_space<vmem>>, %arg6: memref<1x32xf32, #tpu.memory_space<vmem>>, %arg7: memref<1x1xf32, #tpu.memory_space<vmem>>, %arg8: memref<1x1x1xf32, #tpu.memory_space<vmem>>) attributes {dimension_semantics = [#tpu.dimension_semantics<parallel>], iteration_bounds = array<i64: 2>, scalar_prefetch = 0 : i64, scratch_operands = 0 : i64, tpu.core_type = #tpu.core_type<tc>, window_params = [{transform_indices = @transform_0, window_bounds = array<i64: 1, 32, 128>}, {pipeline_mode = #tpu.pipeline_mode<synchronous>, transform_indices = @transform_1, window_bounds = array<i64: 32, 32>}, {pipeline_mode = #tpu.pipeline_mode<synchronous>, transform_indices = @transform_2, window_bounds = array<i64: 32, 1>}, {pipeline_mode = #tpu.pipeline_mode<synchronous>, transform_indices = @transform_3, window_bounds = array<i64: 8, 32, 32>}, {pipeline_mode = #tpu.pipeline_mode<synchronous>, transform_indices = @transform_4, window_bounds = array<i64: 1, 32>}, {pipeline_mode = #tpu.pipeline_mode<synchronous>, transform_indices = @transform_5, window_bounds = array<i64: 1, 32>}, {pipeline_mode = #tpu.pipeline_mode<synchronous>, transform_indices = @transform_6, window_bounds = array<i64: 1, 1>}, {transform_indices = @transform_7, window_bounds = array<i64: 1, 1, 1>}]} {
    %c0 = arith.constant 0 : index
    %c0_0 = arith.constant 0 : index
    %c0_1 = arith.constant 0 : index
    %0 = vector.load %arg1[%c0, %c0_0, %c0_1] : memref<1x32x128xbf16, #tpu.memory_space<vmem>>, vector<1x32x128xbf16>
    %1 = vector.shape_cast %0 : vector<1x32x128xbf16> to vector<32x128xbf16>
    %c0_2 = arith.constant 0 : index
    %c0_3 = arith.constant 0 : index
    %2 = vector.load %arg2[%c0_2, %c0_3] : memref<32x32xbf16, #tpu.memory_space<vmem>>, vector<32x32xbf16>
    %cst = arith.constant dense<0.000000e+00> : vector<32x128xf32>
    %3 = tpu.matmul %2, %1, %cst {dimension_numbers = #tpu.dot_dimension_numbers<[1], [0], [0], [1], [0, 0, 1, 1], [], []>} : vector<32x32xbf16>, vector<32x128xbf16>, vector<32x128xf32> -> vector<32x128xf32>
    %c0_4 = arith.constant 0 : index
    %c0_5 = arith.constant 0 : index
    %4 = vector.load %arg3[%c0_4, %c0_5] : memref<32x1xf32, #tpu.memory_space<vmem>>, vector<32x1xf32>
    %5 = vector.broadcast %4 : vector<32x1xf32> to vector<32x128xf32>
    %6 = arith.addf %3, %5 : vector<32x128xf32>
    %cst_6 = arith.constant 0.000000e+00 : f32
    %7 = vector.broadcast %cst_6 : f32 to vector<32x128xf32>
    %8 = arith.maximumf %6, %7 : vector<32x128xf32>
    %9 = vector.extract_strided_slice %8 {offsets = [0, 0], sizes = [32, 16], strides = [1, 1]} : vector<32x128xf32> to vector<32x16xf32>
    %cst_7 = arith.constant dense<0.000000e+00> : vector<32xf32>
    %10 = vector.multi_reduction <add>, %9, %cst_7 [1] : vector<32x16xf32> to vector<32xf32>
    %11 = vector.shape_cast %10 : vector<32xf32> to vector<32x1xf32>
    %c0_8 = arith.constant 0 : index
    %c0_9 = arith.constant 0 : index
    %c0_10 = arith.constant 0 : index
    %12 = vector.load %arg4[%c0_8, %c0_9, %c0_10] : memref<8x32x32xf32, #tpu.memory_space<vmem>>, vector<1x32x32xf32>
    %13 = vector.shape_cast %12 : vector<1x32x32xf32> to vector<32x32xf32>
    %14 = vector.broadcast %11 : vector<32x1xf32> to vector<32x32xf32>
    %15 = arith.mulf %13, %14 : vector<32x32xf32>
    %16 = vector.extract_strided_slice %8 {offsets = [0, 16], sizes = [32, 16], strides = [1, 1]} : vector<32x128xf32> to vector<32x16xf32>
    %cst_11 = arith.constant dense<0.000000e+00> : vector<32xf32>
    %17 = vector.multi_reduction <add>, %16, %cst_11 [1] : vector<32x16xf32> to vector<32xf32>
    %18 = vector.shape_cast %17 : vector<32xf32> to vector<32x1xf32>
    %c1 = arith.constant 1 : index
    %c0_12 = arith.constant 0 : index
    %c0_13 = arith.constant 0 : index
    %19 = vector.load %arg4[%c1, %c0_12, %c0_13] : memref<8x32x32xf32, #tpu.memory_space<vmem>>, vector<1x32x32xf32>
    %20 = vector.shape_cast %19 : vector<1x32x32xf32> to vector<32x32xf32>
    %21 = vector.broadcast %18 : vector<32x1xf32> to vector<32x32xf32>
    %22 = arith.mulf %20, %21 : vector<32x32xf32>
    %23 = arith.addf %15, %22 : vector<32x32xf32>
    %24 = vector.extract_strided_slice %8 {offsets = [0, 32], sizes = [32, 16], strides = [1, 1]} : vector<32x128xf32> to vector<32x16xf32>
    %cst_14 = arith.constant dense<0.000000e+00> : vector<32xf32>
    %25 = vector.multi_reduction <add>, %24, %cst_14 [1] : vector<32x16xf32> to vector<32xf32>
    %26 = vector.shape_cast %25 : vector<32xf32> to vector<32x1xf32>
    %c2 = arith.constant 2 : index
    %c0_15 = arith.constant 0 : index
    %c0_16 = arith.constant 0 : index
    %27 = vector.load %arg4[%c2, %c0_15, %c0_16] : memref<8x32x32xf32, #tpu.memory_space<vmem>>, vector<1x32x32xf32>
    %28 = vector.shape_cast %27 : vector<1x32x32xf32> to vector<32x32xf32>
    %29 = vector.broadcast %26 : vector<32x1xf32> to vector<32x32xf32>
    %30 = arith.mulf %28, %29 : vector<32x32xf32>
    %31 = arith.addf %23, %30 : vector<32x32xf32>
    %32 = vector.extract_strided_slice %8 {offsets = [0, 48], sizes = [32, 16], strides = [1, 1]} : vector<32x128xf32> to vector<32x16xf32>
    %cst_17 = arith.constant dense<0.000000e+00> : vector<32xf32>
    %33 = vector.multi_reduction <add>, %32, %cst_17 [1] : vector<32x16xf32> to vector<32xf32>
    %34 = vector.shape_cast %33 : vector<32xf32> to vector<32x1xf32>
    %c3 = arith.constant 3 : index
    %c0_18 = arith.constant 0 : index
    %c0_19 = arith.constant 0 : index
    %35 = vector.load %arg4[%c3, %c0_18, %c0_19] : memref<8x32x32xf32, #tpu.memory_space<vmem>>, vector<1x32x32xf32>
    %36 = vector.shape_cast %35 : vector<1x32x32xf32> to vector<32x32xf32>
    %37 = vector.broadcast %34 : vector<32x1xf32> to vector<32x32xf32>
    %38 = arith.mulf %36, %37 : vector<32x32xf32>
    %39 = arith.addf %31, %38 : vector<32x32xf32>
    %40 = vector.extract_strided_slice %8 {offsets = [0, 64], sizes = [32, 16], strides = [1, 1]} : vector<32x128xf32> to vector<32x16xf32>
    %cst_20 = arith.constant dense<0.000000e+00> : vector<32xf32>
    %41 = vector.multi_reduction <add>, %40, %cst_20 [1] : vector<32x16xf32> to vector<32xf32>
    %42 = vector.shape_cast %41 : vector<32xf32> to vector<32x1xf32>
    %c4 = arith.constant 4 : index
    %c0_21 = arith.constant 0 : index
    %c0_22 = arith.constant 0 : index
    %43 = vector.load %arg4[%c4, %c0_21, %c0_22] : memref<8x32x32xf32, #tpu.memory_space<vmem>>, vector<1x32x32xf32>
    %44 = vector.shape_cast %43 : vector<1x32x32xf32> to vector<32x32xf32>
    %45 = vector.broadcast %42 : vector<32x1xf32> to vector<32x32xf32>
    %46 = arith.mulf %44, %45 : vector<32x32xf32>
    %47 = arith.addf %39, %46 : vector<32x32xf32>
    %48 = vector.extract_strided_slice %8 {offsets = [0, 80], sizes = [32, 16], strides = [1, 1]} : vector<32x128xf32> to vector<32x16xf32>
    %cst_23 = arith.constant dense<0.000000e+00> : vector<32xf32>
    %49 = vector.multi_reduction <add>, %48, %cst_23 [1] : vector<32x16xf32> to vector<32xf32>
    %50 = vector.shape_cast %49 : vector<32xf32> to vector<32x1xf32>
    %c5 = arith.constant 5 : index
    %c0_24 = arith.constant 0 : index
    %c0_25 = arith.constant 0 : index
    %51 = vector.load %arg4[%c5, %c0_24, %c0_25] : memref<8x32x32xf32, #tpu.memory_space<vmem>>, vector<1x32x32xf32>
    %52 = vector.shape_cast %51 : vector<1x32x32xf32> to vector<32x32xf32>
    %53 = vector.broadcast %50 : vector<32x1xf32> to vector<32x32xf32>
    %54 = arith.mulf %52, %53 : vector<32x32xf32>
    %55 = arith.addf %47, %54 : vector<32x32xf32>
    %56 = vector.extract_strided_slice %8 {offsets = [0, 96], sizes = [32, 16], strides = [1, 1]} : vector<32x128xf32> to vector<32x16xf32>
    %cst_26 = arith.constant dense<0.000000e+00> : vector<32xf32>
    %57 = vector.multi_reduction <add>, %56, %cst_26 [1] : vector<32x16xf32> to vector<32xf32>
    %58 = vector.shape_cast %57 : vector<32xf32> to vector<32x1xf32>
    %c6 = arith.constant 6 : index
    %c0_27 = arith.constant 0 : index
    %c0_28 = arith.constant 0 : index
    %59 = vector.load %arg4[%c6, %c0_27, %c0_28] : memref<8x32x32xf32, #tpu.memory_space<vmem>>, vector<1x32x32xf32>
    %60 = vector.shape_cast %59 : vector<1x32x32xf32> to vector<32x32xf32>
    %61 = vector.broadcast %58 : vector<32x1xf32> to vector<32x32xf32>
    %62 = arith.mulf %60, %61 : vector<32x32xf32>
    %63 = arith.addf %55, %62 : vector<32x32xf32>
    %64 = vector.extract_strided_slice %8 {offsets = [0, 112], sizes = [32, 16], strides = [1, 1]} : vector<32x128xf32> to vector<32x16xf32>
    %cst_29 = arith.constant dense<0.000000e+00> : vector<32xf32>
    %65 = vector.multi_reduction <add>, %64, %cst_29 [1] : vector<32x16xf32> to vector<32xf32>
    %66 = vector.shape_cast %65 : vector<32xf32> to vector<32x1xf32>
    %c7 = arith.constant 7 : index
    %c0_30 = arith.constant 0 : index
    %c0_31 = arith.constant 0 : index
    %67 = vector.load %arg4[%c7, %c0_30, %c0_31] : memref<8x32x32xf32, #tpu.memory_space<vmem>>, vector<1x32x32xf32>
    %68 = vector.shape_cast %67 : vector<1x32x32xf32> to vector<32x32xf32>
    %69 = vector.broadcast %66 : vector<32x1xf32> to vector<32x32xf32>
    %70 = arith.mulf %68, %69 : vector<32x32xf32>
    %71 = arith.addf %63, %70 : vector<32x32xf32>
    %cst_32 = arith.constant dense<0.000000e+00> : vector<32xf32>
    %72 = vector.multi_reduction <add>, %71, %cst_32 [0] : vector<32x32xf32> to vector<32xf32>
    %73 = vector.shape_cast %72 : vector<32xf32> to vector<1x32xf32>
    %c0_33 = arith.constant 0 : index
    %c0_34 = arith.constant 0 : index
    %74 = vector.load %arg5[%c0_33, %c0_34] : memref<1x32xf32, #tpu.memory_space<vmem>>, vector<1x32xf32>
    %75 = arith.addf %73, %74 : vector<1x32xf32>
    %cst_35 = arith.constant 0.000000e+00 : f32
    %76 = vector.broadcast %cst_35 : f32 to vector<1x32xf32>
    %77 = arith.maximumf %75, %76 : vector<1x32xf32>
    %c0_36 = arith.constant 0 : index
    %c0_37 = arith.constant 0 : index
    %78 = vector.load %arg6[%c0_36, %c0_37] : memref<1x32xf32, #tpu.memory_space<vmem>>, vector<1x32xf32>
    %79 = arith.mulf %77, %78 : vector<1x32xf32>
    %cst_38 = arith.constant dense<0.000000e+00> : vector<1xf32>
    %80 = vector.multi_reduction <add>, %79, %cst_38 [1] : vector<1x32xf32> to vector<1xf32>
    %81 = vector.shape_cast %80 : vector<1xf32> to vector<1x1xf32>
    %c0_39 = arith.constant 0 : index
    %c0_40 = arith.constant 0 : index
    %82 = vector.load %arg7[%c0_39, %c0_40] : memref<1x1xf32, #tpu.memory_space<vmem>>, vector<1x1xf32>
    %83 = arith.addf %81, %82 : vector<1x1xf32>
    %c0_41 = arith.constant 0 : index
    %c0_42 = arith.constant 0 : index
    %c0_43 = arith.constant 0 : index
    %84 = vector.load %arg8[%c0_41, %c0_42, %c0_43] : memref<1x1x1xf32, #tpu.memory_space<vmem>>, vector<1x1x1xf32>
    %85 = vector.shape_cast %84 : vector<1x1x1xf32> to vector<1x1xf32>
    %86 = vector.shape_cast %83 : vector<1x1xf32> to vector<1x1x1xf32>
    tpu.vector_store %arg8[%c0_41, %c0_42, %c0_43], %86 {strides = array<i32>} : memref<1x1x1xf32, #tpu.memory_space<vmem>>, vector<1x1x1xf32>,
    return
  }
  func.func @transform_0(%arg0: i32) -> (i32, i32, i32) {
    %c0_i32 = arith.constant 0 : i32
    %c0_i32_0 = arith.constant 0 : i32
    %c0_i32_1 = arith.constant 0 : i32
    return %arg0, %c0_i32, %c0_i32_0 : i32, i32, i32
  }
  func.func @transform_1(%arg0: i32) -> (i32, i32) {
    %c0_i32 = arith.constant 0 : i32
    %c0_i32_0 = arith.constant 0 : i32
    %c0_i32_1 = arith.constant 0 : i32
    return %c0_i32, %c0_i32_0 : i32, i32
  }
  func.func @transform_2(%arg0: i32) -> (i32, i32) {
    %c0_i32 = arith.constant 0 : i32
    %c0_i32_0 = arith.constant 0 : i32
    %c0_i32_1 = arith.constant 0 : i32
    return %c0_i32, %c0_i32_0 : i32, i32
  }
  func.func @transform_3(%arg0: i32) -> (i32, i32, i32) {
    %c0_i32 = arith.constant 0 : i32
    %c0_i32_0 = arith.constant 0 : i32
    %c0_i32_1 = arith.constant 0 : i32
    %c0_i32_2 = arith.constant 0 : i32
    return %c0_i32, %c0_i32_0, %c0_i32_1 : i32, i32, i32
  }
  func.func @transform_4(%arg0: i32) -> (i32, i32) {
    %c0_i32 = arith.constant 0 : i32
    %c0_i32_0 = arith.constant 0 : i32
    %c0_i32_1 = arith.constant 0 : i32
    return %c0_i32, %c0_i32_0 : i32, i32
  }
  func.func @transform_5(%arg0: i32) -> (i32, i32) {
    %c0_i32 = arith.constant 0 : i32
    %c0_i32_0 = arith.constant 0 : i32
    %c0_i32_1 = arith.constant 0 : i32
    return %c0_i32, %c0_i32_0 : i32, i32
  }
  func.func @transform_6(%arg0: i32) -> (i32, i32) {
    %c0_i32 = arith.constant 0 : i32
    %c0_i32_0 = arith.constant 0 : i32
    %c0_i32_1 = arith.constant 0 : i32
    return %c0_i32, %c0_i32_0 : i32, i32
  }
  func.func @transform_7(%arg0: i32) -> (i32, i32, i32) {
    %c0_i32 = arith.constant 0 : i32
    %c0_i32_0 = arith.constant 0 : i32
    %c0_i32_1 = arith.constant 0 : i32
    return %arg0, %c0_i32, %c0_i32_0 : i32, i32, i32
  }
}

</mosaic_0001>

<llo_original>
// kernel: mlp_hr_forward.1
$region0: #{mlp_hr_forward.1}
  #allocation0 [shape = 'u32[]', space=smem, size = 0x4, offset = 0x4, fixed_abs, tag = 'smem constant byte address 0x4 - core index']
  #allocation1 [shape = 'u32[144,128]{1,0:T(1,128)}', space=vmem, size = 0x12000, scoped, tag = 'internal scratch']
  #allocation2 [shape = 'f32[1,1]{1,0:T(1,128)S(1)}', space=vmem, size = 0x200, scoped, tag = 'scoped memory for mlp_hr_forward.1']
  %s0 = inlined_call_operand.vmem [shape: bf16[2,32,128], index: 0, kind: input, shape index: {}]
  %s1 = inlined_call_operand.vmem [shape: bf16[32,32], index: 1, kind: input, shape index: {}]
  %s2 = inlined_call_operand.vmem [shape: f32[32,1], index: 2, kind: input, shape index: {}]
  %s3 = inlined_call_operand.vmem [shape: f32[8,32,32], index: 3, kind: input, shape index: {}]
  %s4 = inlined_call_operand.vmem [shape: f32[1,32], index: 4, kind: input, shape index: {}]
  %s5 = inlined_call_operand.vmem [shape: f32[1,32], index: 5, kind: input, shape index: {}]
  %s6 = inlined_call_operand.<no memory space> [shape: f32[1,1], index: 6, kind: input, shape index: {}]
  %s7 = inlined_call_operand.vmem [shape: f32[2,1,1], index: 7, kind: output, shape index: {}]
  %s8 = sld [smem:[#allocation0]]
  $region61: #{mlp_hr_forward.1} parent=0
    _
  %s10 = ssub.s32 1, %s8
  %s11 = scalar_select 0, %s10, %s8
  %v12 = vstv %s6
  %13 = vst [vmem:[#allocation2] sm:$0x1] %v12
  loop: start=0, step=1, limit=4
  $region2: #{mlp_hr_forward.1} parent=0 // loop_pre_header
    _
  $region3: #{mlp_hr_forward.1} parent=0 // loop_header
    %s15 = sphi 0, %s19
    %p16 = scmp.ge.s32.totalorder %s15, 4
    %s25 = sphi 0, %s27
    %s28 = sphi 0, %s25
    %s29 = sphi 0, %s28
    %s45 = sphi 0, %s29
    %s49 = sphi 0, %s49
    %s51 = sphi 0, %s49
    %s52 = sphi 0, %s51
    %s66 = sphi 0, %s52
    %s70 = sphi 0, %s70
    %s72 = sphi 0, %s70
    %s73 = sphi 0, %s72
    %s87 = sphi 0, %s73
    %s91 = sphi 0, %s91
    %s93 = sphi 0, %s91
    %s94 = sphi 0, %s93
    %s108 = sphi 0, %s94
    %s112 = sphi 0, %s112
    %s114 = sphi 0, %s112
    %s115 = sphi 0, %s114
    %s129 = sphi 0, %s115
    %s133 = sphi 0, %s133
    %s135 = sphi 0, %s133
    %s136 = sphi 0, %s135
    %s150 = sphi 0, %s136
    %s154 = sphi 0, %s154
    %s156 = sphi 0, %s154
    %s157 = sphi 0, %s156
    %s171 = sphi 0, %s157
    %s177 = sphi 0, %s179
    %s180 = sphi 0, %s177
    %s181 = sphi 0, %s180
    %s197 = sphi 0, %s181
  $region4: #{mlp_hr_forward.1} parent=0 // loop_header_branch
    %18 = sbr.rel (%p16) target = $region8
  $region5: #{mlp_hr_forward.1} parent=0 // loop_body
    %s20 = ssub.s32 %s15, 1
    %s21 = ssub.s32 %s15, 2
    %s22 = sadd.s32 %s15, 1
    %s23 = ssub.s32 %s15, %s22
    %p24 = scmp.eq.s32.totalorder %s23, 0
    %s26 = sadd.s32 %s25, 1
    %s27 = scalar_select %p24, %s25, %s26
    %p30 = pneg %p24
    %p31 = scmp.eq.s32.totalorder %s15, 1
    %p32 = por %p30, %p31
    %p33 = scmp.ne.s32.totalorder %s25, %s28
    %p34 = scmp.eq.s32.totalorder %s15, 0
    %p35 = por %p33, %p34
    %p36 = scmp.ne.s32.totalorder %s25, %s28
    %p37 = scmp.eq.s32.totalorder %s20, 1
    %p38 = por %p36, %p37
    %p39 = scmp.ne.s32.totalorder %s28, %s29
    %p40 = scmp.eq.s32.totalorder %s20, 0
    %p41 = por %p39, %p40
    %p42 = scmp.ne.s32.totalorder %s28, %s29
    %p43 = scmp.eq.s32.totalorder %s21, 1
    %p44 = por %p42, %p43
    %p46 = scmp.ne.s32.totalorder %s29, %s45
    %p47 = scmp.eq.s32.totalorder %s21, 0
    %p48 = por %p46, %p47
    %s50 = sadd.s32 %s49, 1
    %p53 = scmp.eq.s32.totalorder %s15, 1
    %p54 = scmp.ne.s32.totalorder %s49, %s51
    %p55 = scmp.eq.s32.totalorder %s15, 0
    %p56 = por %p54, %p55
    %p57 = scmp.ne.s32.totalorder %s49, %s51
    %p58 = scmp.eq.s32.totalorder %s20, 1
    %p59 = por %p57, %p58
    %p60 = scmp.ne.s32.totalorder %s51, %s52
    %p61 = scmp.eq.s32.totalorder %s20, 0
    %p62 = por %p60, %p61
    %p63 = scmp.ne.s32.totalorder %s51, %s52
    %p64 = scmp.eq.s32.totalorder %s21, 1
    %p65 = por %p63, %p64
    %p67 = scmp.ne.s32.totalorder %s52, %s66
    %p68 = scmp.eq.s32.totalorder %s21, 0
    %p69 = por %p67, %p68
    %s71 = sadd.s32 %s70, 1
    %p74 = scmp.eq.s32.totalorder %s15, 1
    %p75 = scmp.ne.s32.totalorder %s70, %s72
    %p76 = scmp.eq.s32.totalorder %s15, 0
    %p77 = por %p75, %p76
    %p78 = scmp.ne.s32.totalorder %s70, %s72
    %p79 = scmp.eq.s32.totalorder %s20, 1
    %p80 = por %p78, %p79
    %p81 = scmp.ne.s32.totalorder %s72, %s73
    %p82 = scmp.eq.s32.totalorder %s20, 0
    %p83 = por %p81, %p82
    %p84 = scmp.ne.s32.totalorder %s72, %s73
    %p85 = scmp.eq.s32.totalorder %s21, 1
    %p86 = por %p84, %p85
    %p88 = scmp.ne.s32.totalorder %s73, %s87
    %p89 = scmp.eq.s32.totalorder %s21, 0
    %p90 = por %p88, %p89
    %s92 = sadd.s32 %s91, 1
    %p95 = scmp.eq.s32.totalorder %s15, 1
    %p96 = scmp.ne.s32.totalorder %s91, %s93
    %p97 = scmp.eq.s32.totalorder %s15, 0
    %p98 = por %p96, %p97
    %p99 = scmp.ne.s32.totalorder %s91, %s93
    %p100 = scmp.eq.s32.totalorder %s20, 1
    %p101 = por %p99, %p100
    %p102 = scmp.ne.s32.totalorder %s93, %s94
    %p103 = scmp.eq.s32.totalorder %s20, 0
    %p104 = por %p102, %p103
    %p105 = scmp.ne.s32.totalorder %s93, %s94
    %p106 = scmp.eq.s32.totalorder %s21, 1
    %p107 = por %p105, %p106
    %p109 = scmp.ne.s32.totalorder %s94, %s108
    %p110 = scmp.eq.s32.totalorder %s21, 0
    %p111 = por %p109, %p110
    %s113 = sadd.s32 %s112, 1
    %p116 = scmp.eq.s32.totalorder %s15, 1
    %p117 = scmp.ne.s32.totalorder %s112, %s114
    %p118 = scmp.eq.s32.totalorder %s15, 0
    %p119 = por %p117, %p118
    %p120 = scmp.ne.s32.totalorder %s112, %s114
    %p121 = scmp.eq.s32.totalorder %s20, 1
    %p122 = por %p120, %p121
    %p123 = scmp.ne.s32.totalorder %s114, %s115
    %p124 = scmp.eq.s32.totalorder %s20, 0
    %p125 = por %p123, %p124
    %p126 = scmp.ne.s32.totalorder %s114, %s115
    %p127 = scmp.eq.s32.totalorder %s21, 1
    %p128 = por %p126, %p127
    %p130 = scmp.ne.s32.totalorder %s115, %s129
    %p131 = scmp.eq.s32.totalorder %s21, 0
    %p132 = por %p130, %p131
    %s134 = sadd.s32 %s133, 1
    %p137 = scmp.eq.s32.totalorder %s15, 1
    %p138 = scmp.ne.s32.totalorder %s133, %s135
    %p139 = scmp.eq.s32.totalorder %s15, 0
    %p140 = por %p138, %p139
    %p141 = scmp.ne.s32.totalorder %s133, %s135
    %p142 = scmp.eq.s32.totalorder %s20, 1
    %p143 = por %p141, %p142
    %p144 = scmp.ne.s32.totalorder %s135, %s136
    %p145 = scmp.eq.s32.totalorder %s20, 0
    %p146 = por %p144, %p145
    %p147 = scmp.ne.s32.totalorder %s135, %s136
    %p148 = scmp.eq.s32.totalorder %s21, 1
    %p149 = por %p147, %p148
    %p151 = scmp.ne.s32.totalorder %s136, %s150
    %p152 = scmp.eq.s32.totalorder %s21, 0
    %p153 = por %p151, %p152
    %s155 = sadd.s32 %s154, 1
    %p158 = scmp.eq.s32.totalorder %s15, 1
    %p159 = scmp.ne.s32.totalorder %s154, %s156
    %p160 = scmp.eq.s32.totalorder %s15, 0
    %p161 = por %p159, %p160
    %p162 = scmp.ne.s32.totalorder %s154, %s156
    %p163 = scmp.eq.s32.totalorder %s20, 1
    %p164 = por %p162, %p163
    %p165 = scmp.ne.s32.totalorder %s156, %s157
    %p166 = scmp.eq.s32.totalorder %s20, 0
    %p167 = por %p165, %p166
    %p168 = scmp.ne.s32.totalorder %s156, %s157
    %p169 = scmp.eq.s32.totalorder %s21, 1
    %p170 = por %p168, %p169
    %p172 = scmp.ne.s32.totalorder %s157, %s171
    %p173 = scmp.eq.s32.totalorder %s21, 0
    %p174 = por %p172, %p173
    %s175 = ssub.s32 %s15, %s22
    %p176 = scmp.eq.s32.totalorder %s175, 0
    %s178 = sadd.s32 %s177, 1
    %s179 = scalar_select %p176, %s177, %s178
    %p182 = pneg %p176
    %p183 = scmp.eq.s32.totalorder %s15, 1
    %p184 = por %p182, %p183
    %p185 = scmp.ne.s32.totalorder %s177, %s180
    %p186 = scmp.eq.s32.totalorder %s15, 0
    %p187 = por %p185, %p186
    %p188 = scmp.ne.s32.totalorder %s177, %s180
    %p189 = scmp.eq.s32.totalorder %s20, 1
    %p190 = por %p188, %p189
    %p191 = scmp.ne.s32.totalorder %s180, %s181
    %p192 = scmp.eq.s32.totalorder %s20, 0
    %p193 = por %p191, %p192
    %p194 = scmp.ne.s32.totalorder %s180, %s181
    %p195 = scmp.eq.s32.totalorder %s21, 1
    %p196 = por %p194, %p195
    %p198 = scmp.ne.s32.totalorder %s181, %s197
    %p199 = scmp.eq.s32.totalorder %s21, 0
    %p200 = por %p198, %p199
    %p201 = scmp.le.s32.totalorder 1, %s15
    %p202 = scmp.lt.s32.totalorder %s15, 3
    %p203 = pnand %p201, %p202
    %p204 = pneg %p203
    // Predicated region
    $region9: #{mlp_hr_forward.1} parent=5 // pred_check
      _
    $region10: #{mlp_hr_forward.1} parent=5 // pred_check_branch
      %206 = sbr.rel (%p203) target = $region12
    $region11: #{mlp_hr_forward.1} parent=5 // pred_region
      %s207 = ssub.s32 %s15, 1
      // Predicated region
      $region13: #{mlp_hr_forward.1} parent=11 // pred_check
        %p208 = pneg %p62
      $region14: #{mlp_hr_forward.1} parent=11 // pred_check_branch
        %210 = sbr.rel (%p208) target = $region16
      $region15: #{mlp_hr_forward.1} parent=11 // pred_region
        _
      $region16: #{mlp_hr_forward.1} parent=11 // pred_fallthru
        _
      // Predicated region
      $region17: #{mlp_hr_forward.1} parent=11 // pred_check
        %p211 = pneg %p83
      $region18: #{mlp_hr_forward.1} parent=11 // pred_check_branch
        %213 = sbr.rel (%p211) target = $region20
      $region19: #{mlp_hr_forward.1} parent=11 // pred_region
        _
      $region20: #{mlp_hr_forward.1} parent=11 // pred_fallthru
        _
      // Predicated region
      $region21: #{mlp_hr_forward.1} parent=11 // pred_check
        %p214 = pneg %p104
      $region22: #{mlp_hr_forward.1} parent=11 // pred_check_branch
        %216 = sbr.rel (%p214) target = $region24
      $region23: #{mlp_hr_forward.1} parent=11 // pred_region
        _
      $region24: #{mlp_hr_forward.1} parent=11 // pred_fallthru
        _
      // Predicated region
      $region25: #{mlp_hr_forward.1} parent=11 // pred_check
        %p217 = pneg %p125
      $region26: #{mlp_hr_forward.1} parent=11 // pred_check_branch
        %219 = sbr.rel (%p217) target = $region28
      $region27: #{mlp_hr_forward.1} parent=11 // pred_region
        _
      $region28: #{mlp_hr_forward.1} parent=11 // pred_fallthru
        _
      // Predicated region
      $region29: #{mlp_hr_forward.1} parent=11 // pred_check
        %p220 = pneg %p146
      $region30: #{mlp_hr_forward.1} parent=11 // pred_check_branch
        %222 = sbr.rel (%p220) target = $region32
      $region31: #{mlp_hr_forward.1} parent=11 // pred_region
        _
      $region32: #{mlp_hr_forward.1} parent=11 // pred_fallthru
        _
      // Predicated region
      $region33: #{mlp_hr_forward.1} parent=11 // pred_check
        %p223 = pneg %p167
      $region34: #{mlp_hr_forward.1} parent=11 // pred_check_branch
        %225 = sbr.rel (%p223) target = $region36
      $region35: #{mlp_hr_forward.1} parent=11 // pred_region
        _
      $region36: #{mlp_hr_forward.1} parent=11 // pred_fallthru
        _
    $region12: #{mlp_hr_forward.1} parent=5 // pred_fallthru
      _
    %p226 = scmp.lt.s32.totalorder %s15, 2
    // Predicated region
    $region37: #{mlp_hr_forward.1} parent=5 // pred_check
      %p227 = pneg %p226
    $region38: #{mlp_hr_forward.1} parent=5 // pred_check_branch
      %229 = sbr.rel (%p227) target = $region40
    $region39: #{mlp_hr_forward.1} parent=5 // pred_region
      // Predicated region
      $region41: #{mlp_hr_forward.1} parent=39 // pred_check
        %p230 = pneg %p35
      $region42: #{mlp_hr_forward.1} parent=39 // pred_check_branch
        %232 = sbr.rel (%p230) target = $region44
      $region43: #{mlp_hr_forward.1} parent=39 // pred_region
        %p233 = scmp.lt.s32.totalorder %s15, 1
        %s234 = scalar_select %p233, %s15, 1
        %s235 = smul.addr %s234, 4
        %s236 = smul.addr %s235, 4
        %s237 = scalar_lea.vmem %s0, %s236
      $region44: #{mlp_hr_forward.1} parent=39 // pred_fallthru
        _
    $region40: #{mlp_hr_forward.1} parent=5 // pred_fallthru
      _
    %p238 = scmp.le.s32.totalorder 1, %s15
    %p239 = scmp.lt.s32.totalorder %s15, 3
    %p240 = pnand %p238, %p239
    %p241 = pneg %p240
    // Predicated region
    $region45: #{mlp_hr_forward.1} parent=5 // pred_check
      _
    $region46: #{mlp_hr_forward.1} parent=5 // pred_check_branch
      %243 = sbr.rel (%p240) target = $region48
    $region47: #{mlp_hr_forward.1} parent=5 // pred_region
      %s244 = ssub.s32 %s15, 1
      %p245 = scmp.lt.s32.totalorder %s20, 1
      %s246 = scalar_select %p245, %s20, 1
      %s247 = smul.addr %s246, 4
      %s248 = smul.addr %s247, 4
      %s249 = scalar_lea.vmem %s0, %s248
      %p250 = pneg %p41
      %p251 = pneg %p38
      %p252 = pneg %p62
      %p253 = pneg %p59
      %p254 = pneg %p83
      %p255 = pneg %p80
      %p256 = pneg %p104
      %p257 = pneg %p101
      %p258 = pneg %p125
      %p259 = pneg %p122
      %p260 = pneg %p146
      %p261 = pneg %p143
      %p262 = pneg %p167
      %p263 = pneg %p164
      %p264 = pneg %p193
      %p265 = pneg %p190
      %p266 = scmp.lt.s32.totalorder %s20, 1
      %s267 = scalar_select %p266, %s20, 1
      %s268 = scalar_lea.vmem %s7, %s267
      %p269 = scmp.lt.s32.totalorder %s20, 1
      %s270 = scalar_select %p269, %s20, 1
      %s271 = smul.addr %s270, 4
      %s272 = smul.addr %s271, 4
      %s273 = scalar_lea.vmem %s0, %s272
      %p274 = scmp.lt.s32.totalorder %s20, 1
      %s275 = scalar_select %p274, %s20, 1
      %s276 = scalar_lea.vmem %s7, %s275
      %v278 = vld [vmem:[%s273] sm:$0xf]
      %v279 = vld [vmem:[%s273 + $0x4] sm:$0xf]
      %v280 = vld [vmem:[%s273 + $0x8] sm:$0xf]
      %v281 = vld [vmem:[%s273 + $0xc] sm:$0xf]
      %v282 = vld [vmem:[%s1] sm:$0xf]
      %v283 = vld [vmem:[%s1 + $0x4] sm:$0xf]
      %v284 = vld [vmem:[%s1 + $0x8] sm:$0xf]
      %v285 = vld [vmem:[%s1 + $0xc] sm:$0xf]
      %v286 = vld [vmem:[%s2] sm:$0xff]
      %v287 = vld [vmem:[%s2 + $0x8] sm:$0xff]
      %v288 = vld [vmem:[%s2 + $0x10] sm:$0xff]
      %v289 = vld [vmem:[%s2 + $0x18] sm:$0xff]
      %291 = vset.pattern.permute.xlu0 0
      %292 = vperm.xlu0 %291, %v286
      %v293 = vpop.permute.xlu0 %292
      %296 = vset.pattern.permute.xlu0 0
      %297 = vperm.xlu0 %296, %v287
      %v298 = vpop.permute.xlu0 %297
      %301 = vset.pattern.permute.xlu0 0
      %302 = vperm.xlu0 %301, %v288
      %v303 = vpop.permute.xlu0 %302
      %306 = vset.pattern.permute.xlu0 0
      %307 = vperm.xlu0 %306, %v289
      %v308 = vpop.permute.xlu0 %307
      %v314 = vunpack.c.l.b16 %v282
      %v315 = vunpack.c.l.b16 %v283
      %v316 = vunpack.c.l.b16 %v284
      %v317 = vunpack.c.l.b16 %v285
      %v318 = vpack.c.b16 %v315, %v314
      %v319 = vpack.c.b16 %v317, %v316
      %v324 = vunpack.c.l.b16 %v278
      %v325 = vunpack.c.l.b16 %v279
      %v326 = vunpack.c.l.b16 %v280
      %v327 = vunpack.c.l.b16 %v281
      %v328 = vpack.c.b16 %v325, %v324
      %v329 = vpack.c.b16 %v327, %v326
      %vm332 = vcmask 261120
      %v334 = vsel %vm332, %v318, 0
      %v337 = vsel %vm332, %v319, 0
      %339 = vmatprep.subr.bf16.mxu0 0
      %340 = vmatpush1.bf16.msra.mxu0 0
      %341 = vmatprep.subr.bf16.mxu0 0
      %342 = vmatpush1.bf16.msra.mxu0 0
      %343 = vmatprep.subr.bf16.mxu0 0
      %344 = vmatpush1.bf16.msra.mxu0 0
      %345 = vmatprep.subr.bf16.mxu0 0
      %346 = vmatpush1.bf16.msra.mxu0 0
      %347 = vmatprep.subr.bf16.mxu0 0
      %348 = vmatpush1.bf16.msra.mxu0 0
      %349 = vmatprep.subr.bf16.mxu0 0
      %350 = vmatpush1.bf16.msra.mxu0 0
      %351 = vmatprep.subr.bf16.mxu0 0
      %352 = vmatpush1.bf16.msra.mxu0 %v329
      %353 = vmatprep.subr.bf16.mxu0 0
      %354 = vmatpush1.bf16.msra.mxu0 %v328
      %355 = vmatprep.subr.bf16.mxu0 0
      %356 = vmatpush2.bf16.msra.mxu0 0
      %357 = vmatprep.subr.bf16.mxu0 0
      %358 = vmatpush2.bf16.msra.mxu0 0
      %359 = vmatprep.subr.bf16.mxu0 0
      %360 = vmatpush2.bf16.msra.mxu0 0
      %361 = vmatprep.subr.bf16.mxu0 0
      %362 = vmatpush2.bf16.msra.mxu0 0
      %363 = vmatprep.subr.bf16.mxu0 0
      %364 = vmatpush2.bf16.msra.mxu0 0
      %365 = vmatprep.subr.bf16.mxu0 0
      %366 = vmatpush2.bf16.msra.mxu0 0
      %367 = vmatprep.subr.bf16.mxu0 0
      %368 = vmatpush2.bf16.msra.mxu0 0
      %369 = vmatprep.subr.bf16.mxu0 0
      %370 = vmatpush2.bf16.msra.mxu0 0
      %371 = vmatprep.mubr.bf16.mxu0 0
      %372 = vmatmul.mubr.bf16.gmra.mxu0 %v334
      %v373 = vpop.f32.mrf.mxu0
      %v374 = vadd.f32 %v293, %v373
      %v375 = vpop.f32.mrf.mxu0
      %v376 = vpop.f32.mrf.mxu0
      %v377 = vadd.f32 %v298, %v376
      %v378 = vpop.f32.mrf.mxu0
      %379 = vmatprep.mubr.bf16.mxu0 0
      %380 = vmatmul.mubr.bf16.gmra.mxu0 %v337
      %v381 = vpop.f32.mrf.mxu0
      %v382 = vadd.f32 %v303, %v381
      %v383 = vpop.f32.mrf.mxu0
      %v384 = vpop.f32.mrf.mxu0
      %v385 = vadd.f32 %v308, %v384
      %v386 = vpop.f32.mrf.mxu0
      %387 = vdwg.mxu0
      %v388 = vmax.f32 %v374, 0.0
      %v389 = vmax.f32 %v377, 0.0
      %v390 = vmax.f32 %v382, 0.0
      %v391 = vmax.f32 %v385, 0.0
      %vm392 = vcmask 130048
      %v393 = vsel %vm392, %v388, 0.0
      %394 = vadd.xlane.f32.xlu0 %v393
      %v395 = vpop.xlane.xlu0 %394
      %v396 = vsel %vm392, %v389, 0.0
      %397 = vadd.xlane.f32.xlu0 %v396
      %v398 = vpop.xlane.xlu0 %397
      %v399 = vsel %vm392, %v390, 0.0
      %400 = vadd.xlane.f32.xlu0 %v399
      %v401 = vpop.xlane.xlu0 %400
      %v402 = vsel %vm392, %v391, 0.0
      %403 = vadd.xlane.f32.xlu0 %v402
      %v404 = vpop.xlane.xlu0 %403
      %v405 = vld [vmem:[%s3] sm:$0xff]
      %v406 = vld [vmem:[%s3 + $0x8] sm:$0xff]
      %v407 = vld [vmem:[%s3 + $0x10] sm:$0xff]
      %v408 = vld [vmem:[%s3 + $0x18] sm:$0xff]
      %v409 = vmul.f32 %v405, %v395
      %v410 = vmul.f32 %v406, %v398
      %v411 = vmul.f32 %v407, %v401
      %v412 = vmul.f32 %v408, %v404
      %417 = vrot.lane.b32.xlu0 %v388, 112
      %v418 = vpop.permute.xlu0 %417
      %419 = vrot.lane.b32.xlu0 %v389, 112
      %v420 = vpop.permute.xlu0 %419
      %421 = vrot.lane.b32.xlu0 %v390, 112
      %v422 = vpop.permute.xlu0 %421
      %423 = vrot.lane.b32.xlu0 %v391, 112
      %v424 = vpop.permute.xlu0 %423
      %v429 = vsel %vm392, %v418, 0.0
      %430 = vadd.xlane.f32.xlu0 %v429
      %v431 = vpop.xlane.xlu0 %430
      %v432 = vsel %vm392, %v420, 0.0
      %433 = vadd.xlane.f32.xlu0 %v432
      %v434 = vpop.xlane.xlu0 %433
      %v435 = vsel %vm392, %v422, 0.0
      %436 = vadd.xlane.f32.xlu0 %v435
      %v437 = vpop.xlane.xlu0 %436
      %v438 = vsel %vm392, %v424, 0.0
      %439 = vadd.xlane.f32.xlu0 %v438
      %v440 = vpop.xlane.xlu0 %439
      %s441 = scalar_lea.vmem %s3, 32
      %v442 = vld [vmem:[%s441] sm:$0xff]
      %v443 = vld [vmem:[%s441 + $0x8] sm:$0xff]
      %v444 = vld [vmem:[%s441 + $0x10] sm:$0xff]
      %v445 = vld [vmem:[%s441 + $0x18] sm:$0xff]
      %v446 = vmul.f32 %v442, %v431
      %v447 = vmul.f32 %v443, %v434
      %v448 = vmul.f32 %v444, %v437
      %v449 = vmul.f32 %v445, %v440
      %v450 = vadd.f32 %v409, %v446
      %v451 = vadd.f32 %v410, %v447
      %v452 = vadd.f32 %v411, %v448
      %v453 = vadd.f32 %v412, %v449
      %454 = vrot.lane.b32.xlu0 %v388, 96
      %v455 = vpop.permute.xlu0 %454
      %456 = vrot.lane.b32.xlu0 %v389, 96
      %v457 = vpop.permute.xlu0 %456
      %458 = vrot.lane.b32.xlu0 %v390, 96
      %v459 = vpop.permute.xlu0 %458
      %460 = vrot.lane.b32.xlu0 %v391, 96
      %v461 = vpop.permute.xlu0 %460
      %v466 = vsel %vm392, %v455, 0.0
      %467 = vadd.xlane.f32.xlu0 %v466
      %v468 = vpop.xlane.xlu0 %467
      %v469 = vsel %vm392, %v457, 0.0
      %470 = vadd.xlane.f32.xlu0 %v469
      %v471 = vpop.xlane.xlu0 %470
      %v472 = vsel %vm392, %v459, 0.0
      %473 = vadd.xlane.f32.xlu0 %v472
      %v474 = vpop.xlane.xlu0 %473
      %v475 = vsel %vm392, %v461, 0.0
      %476 = vadd.xlane.f32.xlu0 %v475
      %v477 = vpop.xlane.xlu0 %476
      %s478 = scalar_lea.vmem %s3, 64
      %v479 = vld [vmem:[%s478] sm:$0xff]
      %v480 = vld [vmem:[%s478 + $0x8] sm:$0xff]
      %v481 = vld [vmem:[%s478 + $0x10] sm:$0xff]
      %v482 = vld [vmem:[%s478 + $0x18] sm:$0xff]
      %v483 = vmul.f32 %v479, %v468
      %v484 = vmul.f32 %v480, %v471
      %v485 = vmul.f32 %v481, %v474
      %v486 = vmul.f32 %v482, %v477
      %v487 = vadd.f32 %v450, %v483
      %v488 = vadd.f32 %v451, %v484
      %v489 = vadd.f32 %v452, %v485
      %v490 = vadd.f32 %v453, %v486
      %491 = vrot.lane.b32.xlu0 %v388, 80
      %v492 = vpop.permute.xlu0 %491
      %493 = vrot.lane.b32.xlu0 %v389, 80
      %v494 = vpop.permute.xlu0 %493
      %495 = vrot.lane.b32.xlu0 %v390, 80
      %v496 = vpop.permute.xlu0 %495
      %497 = vrot.lane.b32.xlu0 %v391, 80
      %v498 = vpop.permute.xlu0 %497
      %v503 = vsel %vm392, %v492, 0.0
      %504 = vadd.xlane.f32.xlu0 %v503
      %v505 = vpop.xlane.xlu0 %504
      %v506 = vsel %vm392, %v494, 0.0
      %507 = vadd.xlane.f32.xlu0 %v506
      %v508 = vpop.xlane.xlu0 %507
      %v509 = vsel %vm392, %v496, 0.0
      %510 = vadd.xlane.f32.xlu0 %v509
      %v511 = vpop.xlane.xlu0 %510
      %v512 = vsel %vm392, %v498, 0.0
      %513 = vadd.xlane.f32.xlu0 %v512
      %v514 = vpop.xlane.xlu0 %513
      %s515 = scalar_lea.vmem %s3, 96
      %v516 = vld [vmem:[%s515] sm:$0xff]
      %v517 = vld [vmem:[%s515 + $0x8] sm:$0xff]
      %v518 = vld [vmem:[%s515 + $0x10] sm:$0xff]
      %v519 = vld [vmem:[%s515 + $0x18] sm:$0xff]
      %v520 = vmul.f32 %v516, %v505
      %v521 = vmul.f32 %v517, %v508
      %v522 = vmul.f32 %v518, %v511
      %v523 = vmul.f32 %v519, %v514
      %v524 = vadd.f32 %v487, %v520
      %v525 = vadd.f32 %v488, %v521
      %v526 = vadd.f32 %v489, %v522
      %v527 = vadd.f32 %v490, %v523
      %528 = vrot.lane.b32.xlu0 %v388, 64
      %v529 = vpop.permute.xlu0 %528
      %530 = vrot.lane.b32.xlu0 %v389, 64
      %v531 = vpop.permute.xlu0 %530
      %532 = vrot.lane.b32.xlu0 %v390, 64
      %v533 = vpop.permute.xlu0 %532
      %534 = vrot.lane.b32.xlu0 %v391, 64
      %v535 = vpop.permute.xlu0 %534
      %v540 = vsel %vm392, %v529, 0.0
      %541 = vadd.xlane.f32.xlu0 %v540
      %v542 = vpop.xlane.xlu0 %541
      %v543 = vsel %vm392, %v531, 0.0
      %544 = vadd.xlane.f32.xlu0 %v543
      %v545 = vpop.xlane.xlu0 %544
      %v546 = vsel %vm392, %v533, 0.0
      %547 = vadd.xlane.f32.xlu0 %v546
      %v548 = vpop.xlane.xlu0 %547
      %v549 = vsel %vm392, %v535, 0.0
      %550 = vadd.xlane.f32.xlu0 %v549
      %v551 = vpop.xlane.xlu0 %550
      %s552 = scalar_lea.vmem %s3, 128
      %v553 = vld [vmem:[%s552] sm:$0xff]
      %v554 = vld [vmem:[%s552 + $0x8] sm:$0xff]
      %v555 = vld [vmem:[%s552 + $0x10] sm:$0xff]
      %v556 = vld [vmem:[%s552 + $0x18] sm:$0xff]
      %v557 = vmul.f32 %v553, %v542
      %v558 = vmul.f32 %v554, %v545
      %v559 = vmul.f32 %v555, %v548
      %v560 = vmul.f32 %v556, %v551
      %v561 = vadd.f32 %v524, %v557
      %v562 = vadd.f32 %v525, %v558
      %v563 = vadd.f32 %v526, %v559
      %v564 = vadd.f32 %v527, %v560
      %565 = vrot.lane.b32.xlu0 %v388, 48
      %v566 = vpop.permute.xlu0 %565
      %567 = vrot.lane.b32.xlu0 %v389, 48
      %v568 = vpop.permute.xlu0 %567
      %569 = vrot.lane.b32.xlu0 %v390, 48
      %v570 = vpop.permute.xlu0 %569
      %571 = vrot.lane.b32.xlu0 %v391, 48
      %v572 = vpop.permute.xlu0 %571
      %v577 = vsel %vm392, %v566, 0.0
      %578 = vadd.xlane.f32.xlu0 %v577
      %v579 = vpop.xlane.xlu0 %578
      %v580 = vsel %vm392, %v568, 0.0
      %581 = vadd.xlane.f32.xlu0 %v580
      %v582 = vpop.xlane.xlu0 %581
      %v583 = vsel %vm392, %v570, 0.0
      %584 = vadd.xlane.f32.xlu0 %v583
      %v585 = vpop.xlane.xlu0 %584
      %v586 = vsel %vm392, %v572, 0.0
      %587 = vadd.xlane.f32.xlu0 %v586
      %v588 = vpop.xlane.xlu0 %587
      %s589 = scalar_lea.vmem %s3, 160
      %v590 = vld [vmem:[%s589] sm:$0xff]
      %v591 = vld [vmem:[%s589 + $0x8] sm:$0xff]
      %v592 = vld [vmem:[%s589 + $0x10] sm:$0xff]
      %v593 = vld [vmem:[%s589 + $0x18] sm:$0xff]
      %v594 = vmul.f32 %v590, %v579
      %v595 = vmul.f32 %v591, %v582
      %v596 = vmul.f32 %v592, %v585
      %v597 = vmul.f32 %v593, %v588
      %v598 = vadd.f32 %v561, %v594
      %v599 = vadd.f32 %v562, %v595
      %v600 = vadd.f32 %v563, %v596
      %v601 = vadd.f32 %v564, %v597
      %602 = vrot.lane.b32.xlu0 %v388, 32
      %v603 = vpop.permute.xlu0 %602
      %604 = vrot.lane.b32.xlu0 %v389, 32
      %v605 = vpop.permute.xlu0 %604
      %606 = vrot.lane.b32.xlu0 %v390, 32
      %v607 = vpop.permute.xlu0 %606
      %608 = vrot.lane.b32.xlu0 %v391, 32
      %v609 = vpop.permute.xlu0 %608
      %v614 = vsel %vm392, %v603, 0.0
      %615 = vadd.xlane.f32.xlu0 %v614
      %v616 = vpop.xlane.xlu0 %615
      %v617 = vsel %vm392, %v605, 0.0
      %618 = vadd.xlane.f32.xlu0 %v617
      %v619 = vpop.xlane.xlu0 %618
      %v620 = vsel %vm392, %v607, 0.0
      %621 = vadd.xlane.f32.xlu0 %v620
      %v622 = vpop.xlane.xlu0 %621
      %v623 = vsel %vm392, %v609, 0.0
      %624 = vadd.xlane.f32.xlu0 %v623
      %v625 = vpop.xlane.xlu0 %624
      %s626 = scalar_lea.vmem %s3, 192
      %v627 = vld [vmem:[%s626] sm:$0xff]
      %v628 = vld [vmem:[%s626 + $0x8] sm:$0xff]
      %v629 = vld [vmem:[%s626 + $0x10] sm:$0xff]
      %v630 = vld [vmem:[%s626 + $0x18] sm:$0xff]
      %v631 = vmul.f32 %v627, %v616
      %v632 = vmul.f32 %v628, %v619
      %v633 = vmul.f32 %v629, %v622
      %v634 = vmul.f32 %v630, %v625
      %v635 = vadd.f32 %v598, %v631
      %v636 = vadd.f32 %v599, %v632
      %v637 = vadd.f32 %v600, %v633
      %v638 = vadd.f32 %v601, %v634
      %639 = vrot.lane.b32.xlu0 %v388, 16
      %v640 = vpop.permute.xlu0 %639
      %641 = vrot.lane.b32.xlu0 %v389, 16
      %v642 = vpop.permute.xlu0 %641
      %643 = vrot.lane.b32.xlu0 %v390, 16
      %v644 = vpop.permute.xlu0 %643
      %645 = vrot.lane.b32.xlu0 %v391, 16
      %v646 = vpop.permute.xlu0 %645
      %v651 = vsel %vm392, %v640, 0.0
      %652 = vadd.xlane.f32.xlu0 %v651
      %v653 = vpop.xlane.xlu0 %652
      %v654 = vsel %vm392, %v642, 0.0
      %655 = vadd.xlane.f32.xlu0 %v654
      %v656 = vpop.xlane.xlu0 %655
      %v657 = vsel %vm392, %v644, 0.0
      %658 = vadd.xlane.f32.xlu0 %v657
      %v659 = vpop.xlane.xlu0 %658
      %v660 = vsel %vm392, %v646, 0.0
      %661 = vadd.xlane.f32.xlu0 %v660
      %v662 = vpop.xlane.xlu0 %661
      %s663 = scalar_lea.vmem %s3, 224
      %v664 = vld [vmem:[%s663] sm:$0xff]
      %v665 = vld [vmem:[%s663 + $0x8] sm:$0xff]
      %v666 = vld [vmem:[%s663 + $0x10] sm:$0xff]
      %v667 = vld [vmem:[%s663 + $0x18] sm:$0xff]
      %v668 = vmul.f32 %v664, %v653
      %v669 = vmul.f32 %v665, %v656
      %v670 = vmul.f32 %v666, %v659
      %v671 = vmul.f32 %v667, %v662
      %v672 = vadd.f32 %v635, %v668
      %v673 = vadd.f32 %v636, %v669
      %v674 = vadd.f32 %v637, %v670
      %v675 = vadd.f32 %v638, %v671
      %v676 = vsel %vm332, %v672, 0.0
      %v677 = vsel %vm332, %v673, 0.0
      %v678 = vadd.f32 %v676, %v677
      %v679 = vsel %vm332, %v674, 0.0
      %v680 = vadd.f32 %v678, %v679
      %v681 = vsel %vm332, %v675, 0.0
      %v682 = vadd.f32 %v680, %v681
      %v683 = vrot.slane %v682, 4
      %v684 = vadd.f32 %v682, %v683
      %v685 = vrot.slane %v684, 2
      %v686 = vadd.f32 %v684, %v685
      %v687 = vrot.slane %v686, 1
      %v688 = vadd.f32 %v686, %v687
      %v689 = vld [vmem:[%s4] sm:$0x1]
      %v690 = vadd.f32 %v688, %v689
      %v691 = vmax.f32 %v690, 0.0
      %v692 = vld [vmem:[%s5] sm:$0x1]
      %v693 = vmul.f32 %v691, %v692
      %vm694 = vcmask 253952
      %v695 = vsel %vm694, %v693, 0.0
      %696 = vadd.xlane.f32.xlu0 %v695
      %v697 = vpop.xlane.xlu0 %696
      %v698 = vld [vmem:[#allocation2] sm:$0x1]
      %v699 = vadd.f32 %v697, %v698
      %vm700 = vcmask 0
      %701 = vst.msk [vmem:[%s276] sm:$0x1] %vm700, %v699
      %p702 = scmp.lt.s32.totalorder %s20, 1
      %s703 = scalar_select %p702, %s20, 1
      %s704 = scalar_lea.vmem %s7, %s703
      // Predicated region
      $region49: #{mlp_hr_forward.1} parent=47 // pred_check
        %p705 = pneg %p190
      $region50: #{mlp_hr_forward.1} parent=47 // pred_check_branch
        %707 = sbr.rel (%p705) target = $region52
      $region51: #{mlp_hr_forward.1} parent=47 // pred_region
        _
      $region52: #{mlp_hr_forward.1} parent=47 // pred_fallthru
        _
    $region48: #{mlp_hr_forward.1} parent=5 // pred_fallthru
      _
    %p708 = scmp.le.s32.totalorder 2, %s15
    // Predicated region
    $region53: #{mlp_hr_forward.1} parent=5 // pred_check
      %p709 = pneg %p708
    $region54: #{mlp_hr_forward.1} parent=5 // pred_check_branch
      %711 = sbr.rel (%p709) target = $region56
    $region55: #{mlp_hr_forward.1} parent=5 // pred_region
      %s712 = ssub.s32 %s15, 2
      // Predicated region
      $region57: #{mlp_hr_forward.1} parent=55 // pred_check
        %p713 = pneg %p196
      $region58: #{mlp_hr_forward.1} parent=55 // pred_check_branch
        %715 = sbr.rel (%p713) target = $region60
      $region59: #{mlp_hr_forward.1} parent=55 // pred_region
        %p716 = scmp.lt.s32.totalorder %s21, 1
        %s717 = scalar_select %p716, %s21, 1
        %s718 = scalar_lea.vmem %s7, %s717
      $region60: #{mlp_hr_forward.1} parent=55 // pred_fallthru
        _
    $region56: #{mlp_hr_forward.1} parent=5 // pred_fallthru
      _
  $region6: #{mlp_hr_forward.1} parent=0 // loop_footer
    %s19 = sadd.s32 1, %s15
  $region7: #{mlp_hr_forward.1} parent=0 // loop_footer_branch
    %14 = sbr.rel target = $region3
  $region8: #{mlp_hr_forward.1} parent=0 // loop_exit
    _

</llo_original>
